<compile_context>
chip_gen: v5e
topology: v5e:2x2
jax: 0.10.0
libtpu: 0.0.40
codegen_flags: <defaults>
</compile_context>

<pallas_src>
import functools

import jax
import jax.numpy as jnp
from jax.experimental import pallas as pl
from jax.experimental.pallas import tpu as pltpu

# std constants from the module's __init__ (mean is all-zeros and unused in forward)
_STD_BOX = (0.1, 0.1, 0.2, 0.2)
_STD_LDM = 0.1  # ones(1, 10) * 0.1
_LANE = 128


# --------------------------------------------------------------------------- #
# Generation-aware tiling helpers (Python-level, evaluated at trace time).
# --------------------------------------------------------------------------- #
def _device_kind():
    try:
        return jax.devices()[0].device_kind.lower()
    except Exception:  # pragma: no cover - defensive
        return ""


def _default_block_ns():
    kind = _device_kind()
    # v6e / v7x: 512 rows of 128 anchors -> 16 MiB double-buffered, well inside
    # the 32 MiB scoped default.  v5e (16 MiB scoped default) and unknown: 256.
    if "v6" in kind or "v7" in kind:
        return 512
    return 256


def _num_tensorcores():
    # v7x has 2 TensorCores per chip; v5e/v6e have 1.
    return 2 if "v7" in _device_kind() else 1


def _pick_tile(ns, block_ns, batch):
    """Largest divisor of ns that is <= block_ns (deterministic, VMEM-bounded)."""
    s = min(block_ns, ns)
    while ns % s != 0:
        s -= 1
    # v7x: make sure the grid has >= 2 steps so both TCs get work.
    if _num_tensorcores() > 1 and batch * (ns // s) < 2 and ns % 2 == 0 and ns > 1:
        s = ns // 2
    return s


# --------------------------------------------------------------------------- #
# Kernel body.
# Blocks: dims (2,) SMEM, anc (1,4,S,128), box (1,4,S,128), ldm (1,10,S,128)
#   ->  boxes (1,4,S,128), ldm (1,10,S,128).
# Every channel slice is a dense (S, 128) tile -> full-vreg VPU ops and
# unmasked, lane-dense vector stores.
# --------------------------------------------------------------------------- #
def _decode_kernel(dims_ref, anc_ref, box_ref, ldm_ref, boxes_out_ref, ldm_out_ref):
    H = dims_ref[0].astype(jnp.float32)
    W = dims_ref[1].astype(jnp.float32)

    x1 = anc_ref[0, 0]
    y1 = anc_ref[0, 1]
    x2 = anc_ref[0, 2]
    y2 = anc_ref[0, 3]

    widths = x2 - x1
    heights = y2 - y1
    ctr_x = x1 + 0.5 * widths
    ctr_y = y1 + 0.5 * heights

    # Hoist std factors into the width/height terms (saves per-channel multiplies).
    w_b = widths * _STD_BOX[0]
    h_b = heights * _STD_BOX[1]
    w_l = widths * _STD_LDM
    h_l = heights * _STD_LDM

    # ---- box decode (deltas may be bf16: cast to f32, compute in f32) ----
    dx = box_ref[0, 0].astype(jnp.float32)
    dy = box_ref[0, 1].astype(jnp.float32)
    dw = box_ref[0, 2].astype(jnp.float32) * _STD_BOX[2]
    dh = box_ref[0, 3].astype(jnp.float32) * _STD_BOX[3]

    pred_ctr_x = ctr_x + dx * w_b
    pred_ctr_y = ctr_y + dy * h_b
    half_w = 0.5 * (jnp.exp(dw) * widths)   # exp -> EUP slot, essentially free here
    half_h = 0.5 * (jnp.exp(dh) * heights)

    boxes_out_ref[0, 0] = jnp.clip(pred_ctr_x - half_w, 0.0, W)
    boxes_out_ref[0, 1] = jnp.clip(pred_ctr_y - half_h, 0.0, H)
    boxes_out_ref[0, 2] = jnp.clip(pred_ctr_x + half_w, 0.0, W)
    boxes_out_ref[0, 3] = jnp.clip(pred_ctr_y + half_h, 0.0, H)

    # ---- landmark decode: 5 (x, y) points, each channel a dense (S,128) tile ----
    for p in range(5):
        lx = ctr_x + ldm_ref[0, 2 * p].astype(jnp.float32) * w_l
        ly = ctr_y + ldm_ref[0, 2 * p + 1].astype(jnp.float32) * h_l
        ldm_out_ref[0, 2 * p] = jnp.clip(lx, 0.0, W)
        ldm_out_ref[0, 2 * p + 1] = jnp.clip(ly, 0.0, H)


# --------------------------------------------------------------------------- #
# Zero-transpose planar fast path.
# --------------------------------------------------------------------------- #
@functools.partial(jax.jit, static_argnames=("block_ns",))
def regression_transform_planar(anc_p, box_p, ldm_p, img_dims, *, block_ns=None):
    """anc_p (B,4,Ns,128) f32, box_p (B,4,Ns,128) f32/bf16, ldm_p (B,10,Ns,128) f32/bf16,
    img_dims (2,) int32 = [img_h, img_w]  ->  boxes (B,4,Ns,128) f32, ldm (B,10,Ns,128) f32."""
    B, _, Ns, L = anc_p.shape
    assert L == _LANE

    if block_ns is None:
        block_ns = _default_block_ns()
    S = _pick_tile(Ns, block_ns, B)
    grid = (B, Ns // S)

    img_dims = img_dims.astype(jnp.int32)

    # Per-step VMEM footprint (double-buffered) + headroom; keeps big tiles legal
    # under any generation's scoped-VMEM default while staying < v7x's 64 MiB/TC.
    tile_elems = S * _LANE
    bytes_in = tile_elems * (4 * 4 + 4 * box_p.dtype.itemsize + 10 * ldm_p.dtype.itemsize)
    bytes_out = tile_elems * 14 * 4
    vmem_limit = int(max(32 << 20, min(2 * (bytes_in + bytes_out) + (8 << 20), 56 << 20)))

    boxes_p, ldms_p = pl.pallas_call(
        _decode_kernel,
        out_shape=(
            jax.ShapeDtypeStruct((B, 4, Ns, _LANE), jnp.float32),
            jax.ShapeDtypeStruct((B, 10, Ns, _LANE), jnp.float32),
        ),
        grid_spec=pltpu.PrefetchScalarGridSpec(
            num_scalar_prefetch=1,            # img_dims -> SMEM, no recompile per resolution
            grid=grid,
            in_specs=[
                pl.BlockSpec((1, 4, S, _LANE), lambda b, n, dims: (b, 0, n, 0)),
                pl.BlockSpec((1, 4, S, _LANE), lambda b, n, dims: (b, 0, n, 0)),
                pl.BlockSpec((1, 10, S, _LANE), lambda b, n, dims: (b, 0, n, 0)),
            ],
            out_specs=[
                pl.BlockSpec((1, 4, S, _LANE), lambda b, n, dims: (b, 0, n, 0)),
                pl.BlockSpec((1, 10, S, _LANE), lambda b, n, dims: (b, 0, n, 0)),
            ],
        ),
        compiler_params=pltpu.CompilerParams(
            dimension_semantics=("parallel", "parallel"),
            vmem_limit_bytes=vmem_limit,
        ),
    )(img_dims, anc_p, box_p, ldm_p)

    return boxes_p, ldms_p


# --------------------------------------------------------------------------- #
# PyTorch-layout compatibility wrapper (B, N, C).
# NOTE: the layout conversion below is XLA-side data movement that dwarfs the
# kernel in a bandwidth-bound op; prefer the planar path end-to-end when the
# detector head can emit (B, C, Ns, 128) directly.
# --------------------------------------------------------------------------- #
def _to_planar(x, B, Ns, C):
    # (B, Ns*128, C) -> (B, C, Ns, 128)
    return jnp.transpose(x.reshape(B, Ns, _LANE, C), (0, 3, 1, 2))


def _from_planar(x, B, N_pad, C):
    # (B, C, Ns, 128) -> (B, Ns*128, C)
    return jnp.transpose(x, (0, 2, 3, 1)).reshape(B, N_pad, C)


@functools.partial(jax.jit, static_argnames=("block_ns",))
def regression_transform(anchors, bbox_deltas, ldm_deltas, img_h, img_w, *, block_ns=None):
    """anchors (B,N,4), bbox_deltas (B,N,4), ldm_deltas (B,N,10), img_h/img_w scalars
    -> boxes (B,N,4), landmarks (B,N,10).  N not divisible by 128 is handled by
    padding; padded anchors (all zeros) decode to zeros and are sliced off."""
    if block_ns is None:
        block_ns = _default_block_ns()

    B, N, _ = anchors.shape
    Ns0 = -(-N // _LANE)                       # cdiv(N, 128)
    if Ns0 > block_ns and Ns0 % block_ns != 0:
        # Pad Ns up to a multiple of block_ns so the kernel always runs full tiles.
        Ns = ((Ns0 + block_ns - 1) // block_ns) * block_ns
    else:
        Ns = Ns0
    N_pad = Ns * _LANE

    def pad(x):
        x = x.astype(jnp.float32)
        if N_pad == N:
            return x
        return jnp.pad(x, ((0, 0), (0, N_pad - N), (0, 0)))

    anc_p = _to_planar(pad(anchors), B, Ns, 4)
    box_p = _to_planar(pad(bbox_deltas), B, Ns, 4)
    ldm_p = _to_planar(pad(ldm_deltas), B, Ns, 10)

    img_dims = jnp.stack(
        [jnp.asarray(img_h, jnp.int32), jnp.asarray(img_w, jnp.int32)])

    boxes_p, ldms_p = regression_transform_planar(
        anc_p, box_p, ldm_p, img_dims, block_ns=block_ns)

    boxes = _from_planar(boxes_p, B, N_pad, 4)[:, :N, :]
    ldms = _from_planar(ldms_p, B, N_pad, 10)[:, :N, :]
    return boxes, ldms


# --------------------------------------------------------------------------- #
# Plain-JAX reference mirroring the PyTorch forward exactly ((B,N,C) layout).
# --------------------------------------------------------------------------- #
def _reference(anchors, bbox_deltas, ldm_deltas, img_h, img_w):
    widths = anchors[:, :, 2] - anchors[:, :, 0]
    heights = anchors[:, :, 3] - anchors[:, :, 1]
    ctr_x = anchors[:, :, 0] + 0.5 * widths
    ctr_y = anchors[:, :, 1] + 0.5 * heights

    std_box = jnp.array(_STD_BOX, dtype=jnp.float32)
    ldm_d = ldm_deltas * _STD_LDM
    box_d = bbox_deltas * std_box

    pred_ctr_x = ctr_x + box_d[:, :, 0] * widths
    pred_ctr_y = ctr_y + box_d[:, :, 1] * heights
    pred_w = jnp.exp(box_d[:, :, 2]) * widths
    pred_h = jnp.exp(box_d[:, :, 3]) * heights

    boxes = jnp.stack(
        [pred_ctr_x - 0.5 * pred_w, pred_ctr_y - 0.5 * pred_h,
         pred_ctr_x + 0.5 * pred_w, pred_ctr_y + 0.5 * pred_h], axis=2)

    pts = []
    for p in range(5):
        pts.append(ctr_x + ldm_d[:, :, 2 * p] * widths)
        pts.append(ctr_y + ldm_d[:, :, 2 * p + 1] * heights)
    ldms = jnp.stack(pts, axis=2)

    boxes = boxes.at[:, :, ::2].set(jnp.clip(boxes[:, :, ::2], 0, img_w))
    boxes = boxes.at[:, :, 1::2].set(jnp.clip(boxes[:, :, 1::2], 0, img_h))
    ldms = ldms.at[:, :, ::2].set(jnp.clip(ldms[:, :, ::2], 0, img_w))
    ldms = ldms.at[:, :, 1::2].set(jnp.clip(ldms[:, :, 1::2], 0, img_h))
    return boxes, ldms


if __name__ == "__main__":
    key = jax.random.PRNGKey(0)
    k1, k2, k3, k4 = jax.random.split(key, 4)

    B, N = 2, 2048         # batch, number of anchors
    C, H, W = 3, 64, 64    # img shape (only H, W are used by the forward)

    # anchors: valid (x1, y1, x2, y2) with x2 > x1, y2 > y1
    cxy = jax.random.uniform(k1, (B, N, 2), minval=8.0, maxval=56.0)
    wh = jax.random.uniform(k2, (B, N, 2), minval=4.0, maxval=24.0)
    anchors = jnp.concatenate([cxy - 0.5 * wh, cxy + 0.5 * wh], axis=2).astype(jnp.float32)

    bbox_deltas = jax.random.normal(k3, (B, N, 4), dtype=jnp.float32)
    ldm_deltas = jax.random.normal(k4, (B, N, 10), dtype=jnp.float32)

    ref_boxes, ref_ldms = _reference(anchors, bbox_deltas, ldm_deltas, H, W)

    # ---- PyTorch-layout compatibility path ----
    pred_boxes, pred_landmarks = regression_transform(
        anchors, bbox_deltas, ldm_deltas, H, W)
    jax.block_until_ready((pred_boxes, pred_landmarks))
    assert jnp.allclose(pred_boxes, ref_boxes, atol=1e-4, rtol=1e-5)
    assert jnp.allclose(pred_landmarks, ref_ldms, atol=1e-4, rtol=1e-5)

    # ---- zero-transpose planar fast path (f32 deltas) ----
    Ns = N // _LANE
    img_dims = jnp.array([H, W], dtype=jnp.int32)
    anc_p = _to_planar(anchors, B, Ns, 4)
    box_p = _to_planar(bbox_deltas, B, Ns, 4)
    ldm_p = _to_planar(ldm_deltas, B, Ns, 10)
    boxes_p, ldms_p = regression_transform_planar(anc_p, box_p, ldm_p, img_dims)
    jax.block_until_ready((boxes_p, ldms_p))
    assert jnp.allclose(_from_planar(boxes_p, B, N, 4), ref_boxes, atol=1e-4, rtol=1e-5)
    assert jnp.allclose(_from_planar(ldms_p, B, N, 10), ref_ldms, atol=1e-4, rtol=1e-5)

    # ---- planar fast path with bf16 deltas (halved delta HBM read traffic) ----
    box16 = bbox_deltas.astype(jnp.bfloat16)
    ldm16 = ldm_deltas.astype(jnp.bfloat16)
    ref_b16, ref_l16 = _reference(
        anchors, box16.astype(jnp.float32), ldm16.astype(jnp.float32), H, W)
    boxes_p16, ldms_p16 = regression_transform_planar(
        anc_p, _to_planar(box16, B, Ns, 4), _to_planar(ldm16, B, Ns, 10), img_dims)
    jax.block_until_ready((boxes_p16, ldms_p16))
    assert jnp.allclose(_from_planar(boxes_p16, B, N, 4), ref_b16, atol=1e-3, rtol=1e-3)
    assert jnp.allclose(_from_planar(ldms_p16, B, N, 10), ref_l16, atol=1e-3, rtol=1e-3)

    # ---- padding path (N not a multiple of 128) ----
    Np = 300
    pb, pl_ = regression_transform(
        anchors[:, :Np], bbox_deltas[:, :Np], ldm_deltas[:, :Np], H, W)
    jax.block_until_ready((pb, pl_))
    assert jnp.allclose(pb, ref_boxes[:, :Np], atol=1e-4, rtol=1e-5)
    assert jnp.allclose(pl_, ref_ldms[:, :Np], atol=1e-4, rtol=1e-5)

    print("KERNEL_OK")
</pallas_src>

<mosaic_0001>
module attributes {stable_mosaic.version = 11 : i64} {
  func.func @_decode_kernel(%arg0: i32, %arg1: i32, %arg2: memref<2xi32, #tpu.memory_space<smem>>, %arg3: memref<1x4x16x128xf32, #tpu.memory_space<vmem>>, %arg4: memref<1x4x16x128xf32, #tpu.memory_space<vmem>>, %arg5: memref<1x10x16x128xf32, #tpu.memory_space<vmem>>, %arg6: memref<1x4x16x128xf32, #tpu.memory_space<vmem>>, %arg7: memref<1x10x16x128xf32, #tpu.memory_space<vmem>>) attributes {dimension_semantics = [#tpu.dimension_semantics<parallel>, #tpu.dimension_semantics<parallel>], iteration_bounds = array<i64: 2, 1>, scalar_prefetch = 1 : i64, scratch_operands = 0 : i64, tpu.core_type = #tpu.core_type<tc>, window_params = [{transform_indices = @transform_0, window_bounds = array<i64: 1, 4, 16, 128>}, {transform_indices = @transform_1, window_bounds = array<i64: 1, 4, 16, 128>}, {transform_indices = @transform_2, window_bounds = array<i64: 1, 10, 16, 128>}, {transform_indices = @transform_3, window_bounds = array<i64: 1, 4, 16, 128>}, {transform_indices = @transform_4, window_bounds = array<i64: 1, 10, 16, 128>}]} {
    %c0 = arith.constant 0 : index
    %0 = memref.load %arg2[%c0] : memref<2xi32, #tpu.memory_space<smem>>
    %1 = arith.sitofp %0 : i32 to f32
    %c1 = arith.constant 1 : index
    %2 = memref.load %arg2[%c1] : memref<2xi32, #tpu.memory_space<smem>>
    %3 = arith.sitofp %2 : i32 to f32
    %c0_0 = arith.constant 0 : index
    %c0_1 = arith.constant 0 : index
    %c0_2 = arith.constant 0 : index
    %c0_3 = arith.constant 0 : index
    %4 = vector.load %arg3[%c0_0, %c0_1, %c0_2, %c0_3] : memref<1x4x16x128xf32, #tpu.memory_space<vmem>>, vector<1x1x16x128xf32>
    %5 = vector.shape_cast %4 : vector<1x1x16x128xf32> to vector<16x128xf32>
    %c0_4 = arith.constant 0 : index
    %c1_5 = arith.constant 1 : index
    %c0_6 = arith.constant 0 : index
    %c0_7 = arith.constant 0 : index
    %6 = vector.load %arg3[%c0_4, %c1_5, %c0_6, %c0_7] : memref<1x4x16x128xf32, #tpu.memory_space<vmem>>, vector<1x1x16x128xf32>
    %7 = vector.shape_cast %6 : vector<1x1x16x128xf32> to vector<16x128xf32>
    %c0_8 = arith.constant 0 : index
    %c2 = arith.constant 2 : index
    %c0_9 = arith.constant 0 : index
    %c0_10 = arith.constant 0 : index
    %8 = vector.load %arg3[%c0_8, %c2, %c0_9, %c0_10] : memref<1x4x16x128xf32, #tpu.memory_space<vmem>>, vector<1x1x16x128xf32>
    %9 = vector.shape_cast %8 : vector<1x1x16x128xf32> to vector<16x128xf32>
    %c0_11 = arith.constant 0 : index
    %c3 = arith.constant 3 : index
    %c0_12 = arith.constant 0 : index
    %c0_13 = arith.constant 0 : index
    %10 = vector.load %arg3[%c0_11, %c3, %c0_12, %c0_13] : memref<1x4x16x128xf32, #tpu.memory_space<vmem>>, vector<1x1x16x128xf32>
    %11 = vector.shape_cast %10 : vector<1x1x16x128xf32> to vector<16x128xf32>
    %12 = arith.subf %9, %5 : vector<16x128xf32>
    %13 = arith.subf %11, %7 : vector<16x128xf32>
    %cst = arith.constant 5.000000e-01 : f32
    %14 = vector.broadcast %cst : f32 to vector<16x128xf32>
    %15 = arith.mulf %14, %12 : vector<16x128xf32>
    %16 = arith.addf %5, %15 : vector<16x128xf32>
    %cst_14 = arith.constant 5.000000e-01 : f32
    %17 = vector.broadcast %cst_14 : f32 to vector<16x128xf32>
    %18 = arith.mulf %17, %13 : vector<16x128xf32>
    %19 = arith.addf %7, %18 : vector<16x128xf32>
    %cst_15 = arith.constant 1.000000e-01 : f32
    %20 = vector.broadcast %cst_15 : f32 to vector<16x128xf32>
    %21 = arith.mulf %12, %20 : vector<16x128xf32>
    %cst_16 = arith.constant 1.000000e-01 : f32
    %22 = vector.broadcast %cst_16 : f32 to vector<16x128xf32>
    %23 = arith.mulf %13, %22 : vector<16x128xf32>
    %cst_17 = arith.constant 1.000000e-01 : f32
    %24 = vector.broadcast %cst_17 : f32 to vector<16x128xf32>
    %25 = arith.mulf %12, %24 : vector<16x128xf32>
    %cst_18 = arith.constant 1.000000e-01 : f32
    %26 = vector.broadcast %cst_18 : f32 to vector<16x128xf32>
    %27 = arith.mulf %13, %26 : vector<16x128xf32>
    %c0_19 = arith.constant 0 : index
    %c0_20 = arith.constant 0 : index
    %c0_21 = arith.constant 0 : index
    %c0_22 = arith.constant 0 : index
    %28 = vector.load %arg4[%c0_19, %c0_20, %c0_21, %c0_22] : memref<1x4x16x128xf32, #tpu.memory_space<vmem>>, vector<1x1x16x128xf32>
    %29 = vector.shape_cast %28 : vector<1x1x16x128xf32> to vector<16x128xf32>
    %c0_23 = arith.constant 0 : index
    %c1_24 = arith.constant 1 : index
    %c0_25 = arith.constant 0 : index
    %c0_26 = arith.constant 0 : index
    %30 = vector.load %arg4[%c0_23, %c1_24, %c0_25, %c0_26] : memref<1x4x16x128xf32, #tpu.memory_space<vmem>>, vector<1x1x16x128xf32>
    %31 = vector.shape_cast %30 : vector<1x1x16x128xf32> to vector<16x128xf32>
    %c0_27 = arith.constant 0 : index
    %c2_28 = arith.constant 2 : index
    %c0_29 = arith.constant 0 : index
    %c0_30 = arith.constant 0 : index
    %32 = vector.load %arg4[%c0_27, %c2_28, %c0_29, %c0_30] : memref<1x4x16x128xf32, #tpu.memory_space<vmem>>, vector<1x1x16x128xf32>
    %33 = vector.shape_cast %32 : vector<1x1x16x128xf32> to vector<16x128xf32>
    %cst_31 = arith.constant 2.000000e-01 : f32
    %34 = vector.broadcast %cst_31 : f32 to vector<16x128xf32>
    %35 = arith.mulf %33, %34 : vector<16x128xf32>
    %c0_32 = arith.constant 0 : index
    %c3_33 = arith.constant 3 : index
    %c0_34 = arith.constant 0 : index
    %c0_35 = arith.constant 0 : index
    %36 = vector.load %arg4[%c0_32, %c3_33, %c0_34, %c0_35] : memref<1x4x16x128xf32, #tpu.memory_space<vmem>>, vector<1x1x16x128xf32>
    %37 = vector.shape_cast %36 : vector<1x1x16x128xf32> to vector<16x128xf32>
    %cst_36 = arith.constant 2.000000e-01 : f32
    %38 = vector.broadcast %cst_36 : f32 to vector<16x128xf32>
    %39 = arith.mulf %37, %38 : vector<16x128xf32>
    %40 = arith.mulf %29, %21 : vector<16x128xf32>
    %41 = arith.addf %16, %40 : vector<16x128xf32>
    %42 = arith.mulf %31, %23 : vector<16x128xf32>
    %43 = arith.addf %19, %42 : vector<16x128xf32>
    %44 = math.exp %35 : vector<16x128xf32>
    %45 = arith.mulf %44, %12 : vector<16x128xf32>
    %cst_37 = arith.constant 5.000000e-01 : f32
    %46 = vector.broadcast %cst_37 : f32 to vector<16x128xf32>
    %47 = arith.mulf %46, %45 : vector<16x128xf32>
    %48 = math.exp %39 : vector<16x128xf32>
    %49 = arith.mulf %48, %13 : vector<16x128xf32>
    %cst_38 = arith.constant 5.000000e-01 : f32
    %50 = vector.broadcast %cst_38 : f32 to vector<16x128xf32>
    %51 = arith.mulf %50, %49 : vector<16x128xf32>
    %52 = arith.subf %41, %47 : vector<16x128xf32>
    %cst_39 = arith.constant 0.000000e+00 : f32
    %53 = vector.broadcast %cst_39 : f32 to vector<16x128xf32>
    %54 = arith.maximumf %53, %52 : vector<16x128xf32>
    %55 = vector.broadcast %3 : f32 to vector<16x128xf32>
    %56 = arith.minimumf %55, %54 : vector<16x128xf32>
    %c0_40 = arith.constant 0 : index
    %c0_41 = arith.constant 0 : index
    %c0_42 = arith.constant 0 : index
    %c0_43 = arith.constant 0 : index
    %57 = vector.load %arg6[%c0_40, %c0_41, %c0_42, %c0_43] : memref<1x4x16x128xf32, #tpu.memory_space<vmem>>, vector<1x1x16x128xf32>
    %58 = vector.shape_cast %57 : vector<1x1x16x128xf32> to vector<16x128xf32>
    %59 = vector.shape_cast %56 : vector<16x128xf32> to vector<1x1x16x128xf32>
    tpu.vector_store %arg6[%c0_40, %c0_41, %c0_42, %c0_43], %59 {strides = array<i32>} : memref<1x4x16x128xf32, #tpu.memory_space<vmem>>, vector<1x1x16x128xf32>,
    %60 = arith.subf %43, %51 : vector<16x128xf32>
    %cst_44 = arith.constant 0.000000e+00 : f32
    %61 = vector.broadcast %cst_44 : f32 to vector<16x128xf32>
    %62 = arith.maximumf %61, %60 : vector<16x128xf32>
    %63 = vector.broadcast %1 : f32 to vector<16x128xf32>
    %64 = arith.minimumf %63, %62 : vector<16x128xf32>
    %c0_45 = arith.constant 0 : index
    %c1_46 = arith.constant 1 : index
    %c0_47 = arith.constant 0 : index
    %c0_48 = arith.constant 0 : index
    %65 = vector.load %arg6[%c0_45, %c1_46, %c0_47, %c0_48] : memref<1x4x16x128xf32, #tpu.memory_space<vmem>>, vector<1x1x16x128xf32>
    %66 = vector.shape_cast %65 : vector<1x1x16x128xf32> to vector<16x128xf32>
    %67 = vector.shape_cast %64 : vector<16x128xf32> to vector<1x1x16x128xf32>
    tpu.vector_store %arg6[%c0_45, %c1_46, %c0_47, %c0_48], %67 {strides = array<i32>} : memref<1x4x16x128xf32, #tpu.memory_space<vmem>>, vector<1x1x16x128xf32>,
    %68 = arith.addf %41, %47 : vector<16x128xf32>
    %cst_49 = arith.constant 0.000000e+00 : f32
    %69 = vector.broadcast %cst_49 : f32 to vector<16x128xf32>
    %70 = arith.maximumf %69, %68 : vector<16x128xf32>
    %71 = vector.broadcast %3 : f32 to vector<16x128xf32>
    %72 = arith.minimumf %71, %70 : vector<16x128xf32>
    %c0_50 = arith.constant 0 : index
    %c2_51 = arith.constant 2 : index
    %c0_52 = arith.constant 0 : index
    %c0_53 = arith.constant 0 : index
    %73 = vector.load %arg6[%c0_50, %c2_51, %c0_52, %c0_53] : memref<1x4x16x128xf32, #tpu.memory_space<vmem>>, vector<1x1x16x128xf32>
    %74 = vector.shape_cast %73 : vector<1x1x16x128xf32> to vector<16x128xf32>
    %75 = vector.shape_cast %72 : vector<16x128xf32> to vector<1x1x16x128xf32>
    tpu.vector_store %arg6[%c0_50, %c2_51, %c0_52, %c0_53], %75 {strides = array<i32>} : memref<1x4x16x128xf32, #tpu.memory_space<vmem>>, vector<1x1x16x128xf32>,
    %76 = arith.addf %43, %51 : vector<16x128xf32>
    %cst_54 = arith.constant 0.000000e+00 : f32
    %77 = vector.broadcast %cst_54 : f32 to vector<16x128xf32>
    %78 = arith.maximumf %77, %76 : vector<16x128xf32>
    %79 = vector.broadcast %1 : f32 to vector<16x128xf32>
    %80 = arith.minimumf %79, %78 : vector<16x128xf32>
    %c0_55 = arith.constant 0 : index
    %c3_56 = arith.constant 3 : index
    %c0_57 = arith.constant 0 : index
    %c0_58 = arith.constant 0 : index
    %81 = vector.load %arg6[%c0_55, %c3_56, %c0_57, %c0_58] : memref<1x4x16x128xf32, #tpu.memory_space<vmem>>, vector<1x1x16x128xf32>
    %82 = vector.shape_cast %81 : vector<1x1x16x128xf32> to vector<16x128xf32>
    %83 = vector.shape_cast %80 : vector<16x128xf32> to vector<1x1x16x128xf32>
    tpu.vector_store %arg6[%c0_55, %c3_56, %c0_57, %c0_58], %83 {strides = array<i32>} : memref<1x4x16x128xf32, #tpu.memory_space<vmem>>, vector<1x1x16x128xf32>,
    %c0_59 = arith.constant 0 : index
    %c0_60 = arith.constant 0 : index
    %c0_61 = arith.constant 0 : index
    %c0_62 = arith.constant 0 : index
    %84 = vector.load %arg5[%c0_59, %c0_60, %c0_61, %c0_62] : memref<1x10x16x128xf32, #tpu.memory_space<vmem>>, vector<1x1x16x128xf32>
    %85 = vector.shape_cast %84 : vector<1x1x16x128xf32> to vector<16x128xf32>
    %86 = arith.mulf %85, %25 : vector<16x128xf32>
    %87 = arith.addf %16, %86 : vector<16x128xf32>
    %c0_63 = arith.constant 0 : index
    %c1_64 = arith.constant 1 : index
    %c0_65 = arith.constant 0 : index
    %c0_66 = arith.constant 0 : index
    %88 = vector.load %arg5[%c0_63, %c1_64, %c0_65, %c0_66] : memref<1x10x16x128xf32, #tpu.memory_space<vmem>>, vector<1x1x16x128xf32>
    %89 = vector.shape_cast %88 : vector<1x1x16x128xf32> to vector<16x128xf32>
    %90 = arith.mulf %89, %27 : vector<16x128xf32>
    %91 = arith.addf %19, %90 : vector<16x128xf32>
    %cst_67 = arith.constant 0.000000e+00 : f32
    %92 = vector.broadcast %cst_67 : f32 to vector<16x128xf32>
    %93 = arith.maximumf %92, %87 : vector<16x128xf32>
    %94 = vector.broadcast %3 : f32 to vector<16x128xf32>
    %95 = arith.minimumf %94, %93 : vector<16x128xf32>
    %c0_68 = arith.constant 0 : index
    %c0_69 = arith.constant 0 : index
    %c0_70 = arith.constant 0 : index
    %c0_71 = arith.constant 0 : index
    %96 = vector.load %arg7[%c0_68, %c0_69, %c0_70, %c0_71] : memref<1x10x16x128xf32, #tpu.memory_space<vmem>>, vector<1x1x16x128xf32>
    %97 = vector.shape_cast %96 : vector<1x1x16x128xf32> to vector<16x128xf32>
    %98 = vector.shape_cast %95 : vector<16x128xf32> to vector<1x1x16x128xf32>
    tpu.vector_store %arg7[%c0_68, %c0_69, %c0_70, %c0_71], %98 {strides = array<i32>} : memref<1x10x16x128xf32, #tpu.memory_space<vmem>>, vector<1x1x16x128xf32>,
    %cst_72 = arith.constant 0.000000e+00 : f32
    %99 = vector.broadcast %cst_72 : f32 to vector<16x128xf32>
    %100 = arith.maximumf %99, %91 : vector<16x128xf32>
    %101 = vector.broadcast %1 : f32 to vector<16x128xf32>
    %102 = arith.minimumf %101, %100 : vector<16x128xf32>
    %c0_73 = arith.constant 0 : index
    %c1_74 = arith.constant 1 : index
    %c0_75 = arith.constant 0 : index
    %c0_76 = arith.constant 0 : index
    %103 = vector.load %arg7[%c0_73, %c1_74, %c0_75, %c0_76] : memref<1x10x16x128xf32, #tpu.memory_space<vmem>>, vector<1x1x16x128xf32>
    %104 = vector.shape_cast %103 : vector<1x1x16x128xf32> to vector<16x128xf32>
    %105 = vector.shape_cast %102 : vector<16x128xf32> to vector<1x1x16x128xf32>
    tpu.vector_store %arg7[%c0_73, %c1_74, %c0_75, %c0_76], %105 {strides = array<i32>} : memref<1x10x16x128xf32, #tpu.memory_space<vmem>>, vector<1x1x16x128xf32>,
    %c0_77 = arith.constant 0 : index
    %c2_78 = arith.constant 2 : index
    %c0_79 = arith.constant 0 : index
    %c0_80 = arith.constant 0 : index
    %106 = vector.load %arg5[%c0_77, %c2_78, %c0_79, %c0_80] : memref<1x10x16x128xf32, #tpu.memory_space<vmem>>, vector<1x1x16x128xf32>
    %107 = vector.shape_cast %106 : vector<1x1x16x128xf32> to vector<16x128xf32>
    %108 = arith.mulf %107, %25 : vector<16x128xf32>
    %109 = arith.addf %16, %108 : vector<16x128xf32>
    %c0_81 = arith.constant 0 : index
    %c3_82 = arith.constant 3 : index
    %c0_83 = arith.constant 0 : index
    %c0_84 = arith.constant 0 : index
    %110 = vector.load %arg5[%c0_81, %c3_82, %c0_83, %c0_84] : memref<1x10x16x128xf32, #tpu.memory_space<vmem>>, vector<1x1x16x128xf32>
    %111 = vector.shape_cast %110 : vector<1x1x16x128xf32> to vector<16x128xf32>
    %112 = arith.mulf %111, %27 : vector<16x128xf32>
    %113 = arith.addf %19, %112 : vector<16x128xf32>
    %cst_85 = arith.constant 0.000000e+00 : f32
    %114 = vector.broadcast %cst_85 : f32 to vector<16x128xf32>
    %115 = arith.maximumf %114, %109 : vector<16x128xf32>
    %116 = vector.broadcast %3 : f32 to vector<16x128xf32>
    %117 = arith.minimumf %116, %115 : vector<16x128xf32>
    %c0_86 = arith.constant 0 : index
    %c2_87 = arith.constant 2 : index
    %c0_88 = arith.constant 0 : index
    %c0_89 = arith.constant 0 : index
    %118 = vector.load %arg7[%c0_86, %c2_87, %c0_88, %c0_89] : memref<1x10x16x128xf32, #tpu.memory_space<vmem>>, vector<1x1x16x128xf32>
    %119 = vector.shape_cast %118 : vector<1x1x16x128xf32> to vector<16x128xf32>
    %120 = vector.shape_cast %117 : vector<16x128xf32> to vector<1x1x16x128xf32>
    tpu.vector_store %arg7[%c0_86, %c2_87, %c0_88, %c0_89], %120 {strides = array<i32>} : memref<1x10x16x128xf32, #tpu.memory_space<vmem>>, vector<1x1x16x128xf32>,
    %cst_90 = arith.constant 0.000000e+00 : f32
    %121 = vector.broadcast %cst_90 : f32 to vector<16x128xf32>
    %122 = arith.maximumf %121, %113 : vector<16x128xf32>
    %123 = vector.broadcast %1 : f32 to vector<16x128xf32>
    %124 = arith.minimumf %123, %122 : vector<16x128xf32>
    %c0_91 = arith.constant 0 : index
    %c3_92 = arith.constant 3 : index
    %c0_93 = arith.constant 0 : index
    %c0_94 = arith.constant 0 : index
    %125 = vector.load %arg7[%c0_91, %c3_92, %c0_93, %c0_94] : memref<1x10x16x128xf32, #tpu.memory_space<vmem>>, vector<1x1x16x128xf32>
    %126 = vector.shape_cast %125 : vector<1x1x16x128xf32> to vector<16x128xf32>
    %127 = vector.shape_cast %124 : vector<16x128xf32> to vector<1x1x16x128xf32>
    tpu.vector_store %arg7[%c0_91, %c3_92, %c0_93, %c0_94], %127 {strides = array<i32>} : memref<1x10x16x128xf32, #tpu.memory_space<vmem>>, vector<1x1x16x128xf32>,
    %c0_95 = arith.constant 0 : index
    %c4 = arith.constant 4 : index
    %c0_96 = arith.constant 0 : index
    %c0_97 = arith.constant 0 : index
    %128 = vector.load %arg5[%c0_95, %c4, %c0_96, %c0_97] : memref<1x10x16x128xf32, #tpu.memory_space<vmem>>, vector<1x1x16x128xf32>
    %129 = vector.shape_cast %128 : vector<1x1x16x128xf32> to vector<16x128xf32>
    %130 = arith.mulf %129, %25 : vector<16x128xf32>
    %131 = arith.addf %16, %130 : vector<16x128xf32>
    %c0_98 = arith.constant 0 : index
    %c5 = arith.constant 5 : index
    %c0_99 = arith.constant 0 : index
    %c0_100 = arith.constant 0 : index
    %132 = vector.load %arg5[%c0_98, %c5, %c0_99, %c0_100] : memref<1x10x16x128xf32, #tpu.memory_space<vmem>>, vector<1x1x16x128xf32>
    %133 = vector.shape_cast %132 : vector<1x1x16x128xf32> to vector<16x128xf32>
    %134 = arith.mulf %133, %27 : vector<16x128xf32>
    %135 = arith.addf %19, %134 : vector<16x128xf32>
    %cst_101 = arith.constant 0.000000e+00 : f32
    %136 = vector.broadcast %cst_101 : f32 to vector<16x128xf32>
    %137 = arith.maximumf %136, %131 : vector<16x128xf32>
    %138 = vector.broadcast %3 : f32 to vector<16x128xf32>
    %139 = arith.minimumf %138, %137 : vector<16x128xf32>
    %c0_102 = arith.constant 0 : index
    %c4_103 = arith.constant 4 : index
    %c0_104 = arith.constant 0 : index
    %c0_105 = arith.constant 0 : index
    %140 = vector.load %arg7[%c0_102, %c4_103, %c0_104, %c0_105] : memref<1x10x16x128xf32, #tpu.memory_space<vmem>>, vector<1x1x16x128xf32>
    %141 = vector.shape_cast %140 : vector<1x1x16x128xf32> to vector<16x128xf32>
    %142 = vector.shape_cast %139 : vector<16x128xf32> to vector<1x1x16x128xf32>
    tpu.vector_store %arg7[%c0_102, %c4_103, %c0_104, %c0_105], %142 {strides = array<i32>} : memref<1x10x16x128xf32, #tpu.memory_space<vmem>>, vector<1x1x16x128xf32>,
    %cst_106 = arith.constant 0.000000e+00 : f32
    %143 = vector.broadcast %cst_106 : f32 to vector<16x128xf32>
    %144 = arith.maximumf %143, %135 : vector<16x128xf32>
    %145 = vector.broadcast %1 : f32 to vector<16x128xf32>
    %146 = arith.minimumf %145, %144 : vector<16x128xf32>
    %c0_107 = arith.constant 0 : index
    %c5_108 = arith.constant 5 : index
    %c0_109 = arith.constant 0 : index
    %c0_110 = arith.constant 0 : index
    %147 = vector.load %arg7[%c0_107, %c5_108, %c0_109, %c0_110] : memref<1x10x16x128xf32, #tpu.memory_space<vmem>>, vector<1x1x16x128xf32>
    %148 = vector.shape_cast %147 : vector<1x1x16x128xf32> to vector<16x128xf32>
    %149 = vector.shape_cast %146 : vector<16x128xf32> to vector<1x1x16x128xf32>
    tpu.vector_store %arg7[%c0_107, %c5_108, %c0_109, %c0_110], %149 {strides = array<i32>} : memref<1x10x16x128xf32, #tpu.memory_space<vmem>>, vector<1x1x16x128xf32>,
    %c0_111 = arith.constant 0 : index
    %c6 = arith.constant 6 : index
    %c0_112 = arith.constant 0 : index
    %c0_113 = arith.constant 0 : index
    %150 = vector.load %arg5[%c0_111, %c6, %c0_112, %c0_113] : memref<1x10x16x128xf32, #tpu.memory_space<vmem>>, vector<1x1x16x128xf32>
    %151 = vector.shape_cast %150 : vector<1x1x16x128xf32> to vector<16x128xf32>
    %152 = arith.mulf %151, %25 : vector<16x128xf32>
    %153 = arith.addf %16, %152 : vector<16x128xf32>
    %c0_114 = arith.constant 0 : index
    %c7 = arith.constant 7 : index
    %c0_115 = arith.constant 0 : index
    %c0_116 = arith.constant 0 : index
    %154 = vector.load %arg5[%c0_114, %c7, %c0_115, %c0_116] : memref<1x10x16x128xf32, #tpu.memory_space<vmem>>, vector<1x1x16x128xf32>
    %155 = vector.shape_cast %154 : vector<1x1x16x128xf32> to vector<16x128xf32>
    %156 = arith.mulf %155, %27 : vector<16x128xf32>
    %157 = arith.addf %19, %156 : vector<16x128xf32>
    %cst_117 = arith.constant 0.000000e+00 : f32
    %158 = vector.broadcast %cst_117 : f32 to vector<16x128xf32>
    %159 = arith.maximumf %158, %153 : vector<16x128xf32>
    %160 = vector.broadcast %3 : f32 to vector<16x128xf32>
    %161 = arith.minimumf %160, %159 : vector<16x128xf32>
    %c0_118 = arith.constant 0 : index
    %c6_119 = arith.constant 6 : index
    %c0_120 = arith.constant 0 : index
    %c0_121 = arith.constant 0 : index
    %162 = vector.load %arg7[%c0_118, %c6_119, %c0_120, %c0_121] : memref<1x10x16x128xf32, #tpu.memory_space<vmem>>, vector<1x1x16x128xf32>
    %163 = vector.shape_cast %162 : vector<1x1x16x128xf32> to vector<16x128xf32>
    %164 = vector.shape_cast %161 : vector<16x128xf32> to vector<1x1x16x128xf32>
    tpu.vector_store %arg7[%c0_118, %c6_119, %c0_120, %c0_121], %164 {strides = array<i32>} : memref<1x10x16x128xf32, #tpu.memory_space<vmem>>, vector<1x1x16x128xf32>,
    %cst_122 = arith.constant 0.000000e+00 : f32
    %165 = vector.broadcast %cst_122 : f32 to vector<16x128xf32>
    %166 = arith.maximumf %165, %157 : vector<16x128xf32>
    %167 = vector.broadcast %1 : f32 to vector<16x128xf32>
    %168 = arith.minimumf %167, %166 : vector<16x128xf32>
    %c0_123 = arith.constant 0 : index
    %c7_124 = arith.constant 7 : index
    %c0_125 = arith.constant 0 : index
    %c0_126 = arith.constant 0 : index
    %169 = vector.load %arg7[%c0_123, %c7_124, %c0_125, %c0_126] : memref<1x10x16x128xf32, #tpu.memory_space<vmem>>, vector<1x1x16x128xf32>
    %170 = vector.shape_cast %169 : vector<1x1x16x128xf32> to vector<16x128xf32>
    %171 = vector.shape_cast %168 : vector<16x128xf32> to vector<1x1x16x128xf32>
    tpu.vector_store %arg7[%c0_123, %c7_124, %c0_125, %c0_126], %171 {strides = array<i32>} : memref<1x10x16x128xf32, #tpu.memory_space<vmem>>, vector<1x1x16x128xf32>,
    %c0_127 = arith.constant 0 : index
    %c8 = arith.constant 8 : index
    %c0_128 = arith.constant 0 : index
    %c0_129 = arith.constant 0 : index
    %172 = vector.load %arg5[%c0_127, %c8, %c0_128, %c0_129] : memref<1x10x16x128xf32, #tpu.memory_space<vmem>>, vector<1x1x16x128xf32>
    %173 = vector.shape_cast %172 : vector<1x1x16x128xf32> to vector<16x128xf32>
    %174 = arith.mulf %173, %25 : vector<16x128xf32>
    %175 = arith.addf %16, %174 : vector<16x128xf32>
    %c0_130 = arith.constant 0 : index
    %c9 = arith.constant 9 : index
    %c0_131 = arith.constant 0 : index
    %c0_132 = arith.constant 0 : index
    %176 = vector.load %arg5[%c0_130, %c9, %c0_131, %c0_132] : memref<1x10x16x128xf32, #tpu.memory_space<vmem>>, vector<1x1x16x128xf32>
    %177 = vector.shape_cast %176 : vector<1x1x16x128xf32> to vector<16x128xf32>
    %178 = arith.mulf %177, %27 : vector<16x128xf32>
    %179 = arith.addf %19, %178 : vector<16x128xf32>
    %cst_133 = arith.constant 0.000000e+00 : f32
    %180 = vector.broadcast %cst_133 : f32 to vector<16x128xf32>
    %181 = arith.maximumf %180, %175 : vector<16x128xf32>
    %182 = vector.broadcast %3 : f32 to vector<16x128xf32>
    %183 = arith.minimumf %182, %181 : vector<16x128xf32>
    %c0_134 = arith.constant 0 : index
    %c8_135 = arith.constant 8 : index
    %c0_136 = arith.constant 0 : index
    %c0_137 = arith.constant 0 : index
    %184 = vector.load %arg7[%c0_134, %c8_135, %c0_136, %c0_137] : memref<1x10x16x128xf32, #tpu.memory_space<vmem>>, vector<1x1x16x128xf32>
    %185 = vector.shape_cast %184 : vector<1x1x16x128xf32> to vector<16x128xf32>
    %186 = vector.shape_cast %183 : vector<16x128xf32> to vector<1x1x16x128xf32>
    tpu.vector_store %arg7[%c0_134, %c8_135, %c0_136, %c0_137], %186 {strides = array<i32>} : memref<1x10x16x128xf32, #tpu.memory_space<vmem>>, vector<1x1x16x128xf32>,
    %cst_138 = arith.constant 0.000000e+00 : f32
    %187 = vector.broadcast %cst_138 : f32 to vector<16x128xf32>
    %188 = arith.maximumf %187, %179 : vector<16x128xf32>
    %189 = vector.broadcast %1 : f32 to vector<16x128xf32>
    %190 = arith.minimumf %189, %188 : vector<16x128xf32>
    %c0_139 = arith.constant 0 : index
    %c9_140 = arith.constant 9 : index
    %c0_141 = arith.constant 0 : index
    %c0_142 = arith.constant 0 : index
    %191 = vector.load %arg7[%c0_139, %c9_140, %c0_141, %c0_142] : memref<1x10x16x128xf32, #tpu.memory_space<vmem>>, vector<1x1x16x128xf32>
    %192 = vector.shape_cast %191 : vector<1x1x16x128xf32> to vector<16x128xf32>
    %193 = vector.shape_cast %190 : vector<16x128xf32> to vector<1x1x16x128xf32>
    tpu.vector_store %arg7[%c0_139, %c9_140, %c0_141, %c0_142], %193 {strides = array<i32>} : memref<1x10x16x128xf32, #tpu.memory_space<vmem>>, vector<1x1x16x128xf32>,
    return
  }
  func.func @transform_0(%arg0: i32, %arg1: i32, %arg2: memref<2xi32, #tpu.memory_space<smem>>) -> (i32, i32, i32, i32) {
    %c0_i32 = arith.constant 0 : i32
    %c0_i32_0 = arith.constant 0 : i32
    %c0_i32_1 = arith.constant 0 : i32
    return %arg0, %c0_i32, %arg1, %c0_i32_0 : i32, i32, i32, i32
  }
  func.func @transform_1(%arg0: i32, %arg1: i32, %arg2: memref<2xi32, #tpu.memory_space<smem>>) -> (i32, i32, i32, i32) {
    %c0_i32 = arith.constant 0 : i32
    %c0_i32_0 = arith.constant 0 : i32
    %c0_i32_1 = arith.constant 0 : i32
    return %arg0, %c0_i32, %arg1, %c0_i32_0 : i32, i32, i32, i32
  }
  func.func @transform_2(%arg0: i32, %arg1: i32, %arg2: memref<2xi32, #tpu.memory_space<smem>>) -> (i32, i32, i32, i32) {
    %c0_i32 = arith.constant 0 : i32
    %c0_i32_0 = arith.constant 0 : i32
    %c0_i32_1 = arith.constant 0 : i32
    return %arg0, %c0_i32, %arg1, %c0_i32_0 : i32, i32, i32, i32
  }
  func.func @transform_3(%arg0: i32, %arg1: i32, %arg2: memref<2xi32, #tpu.memory_space<smem>>) -> (i32, i32, i32, i32) {
    %c0_i32 = arith.constant 0 : i32
    %c0_i32_0 = arith.constant 0 : i32
    %c0_i32_1 = arith.constant 0 : i32
    return %arg0, %c0_i32, %arg1, %c0_i32_0 : i32, i32, i32, i32
  }
  func.func @transform_4(%arg0: i32, %arg1: i32, %arg2: memref<2xi32, #tpu.memory_space<smem>>) -> (i32, i32, i32, i32) {
    %c0_i32 = arith.constant 0 : i32
    %c0_i32_0 = arith.constant 0 : i32
    %c0_i32_1 = arith.constant 0 : i32
    return %arg0, %c0_i32, %arg1, %c0_i32_0 : i32, i32, i32, i32
  }
}

</mosaic_0001>

<llo_original>
// kernel: regression_transform_planar.1
$region0: #{regression_transform_planar.1}
  #allocation0 [shape = 'u32[]', space=smem, size = 0x4, offset = 0x4, fixed_abs, tag = 'smem constant byte address 0x4 - core index']
  #allocation1 [shape = 'u32[72,128]{1,0:T(1,128)}', space=vmem, size = 0x9000, scoped, tag = 'internal scratch']
  #allocation2 [shape = 's32[1]{0}', space=sflag, size = 0x4, scoped, tag = 'scoped memory for regression_transform_planar.1']
  #allocation3 [shape = 'u8[512]{0}', space=smem, size = 0x200, scoped, tag = 'prefetched SMEM operand 0']
  %s0 = inlined_call_operand.vmem [shape: s32[2], index: 0, kind: input, shape index: {}]
  %s1 = inlined_call_operand.hbm [shape: f32[2,4,16,128], index: 1, kind: input, shape index: {}]
  %s2 = inlined_call_operand.hbm [shape: f32[2,4,16,128], index: 2, kind: input, shape index: {}]
  %s3 = inlined_call_operand.hbm [shape: f32[2,10,16,128], index: 3, kind: input, shape index: {}]
  %s4 = inlined_call_operand.hbm [shape: f32[2,4,16,128], index: 4, kind: output, shape index: {0}]
  %s5 = inlined_call_operand.hbm [shape: f32[2,10,16,128], index: 5, kind: output, shape index: {1}]
  %6 = xla_tuple %s4, %s5
  %s7 = sld [smem:[#allocation0]]
  $region65: #{regression_transform_planar.1} parent=0
    _
  %s9 = ssub.s32 1, %s7
  %s10 = scalar_select 0, %s9, %s7
  %s12 = sshll.u32 %s0, 4
  %s13 = int_to_ptr.vmem [resolvable:$true] %s12
  %15 = dma.vmem_to_smem %s13, 16, [#allocation3], [#allocation2]
  %17 = dma.done [#allocation2], 16
  %18 = sfence
  $region1: #{regression_transform_planar.1} parent=0
    #allocation4 [shape = 'u8[65536]{0}', space=vmem, size = 0x10000, scoped, tag = 'input window, operand 1']
    #allocation5 [shape = 's32[2]{0}', space=sflag, size = 0x8, scoped, tag = 'scoped memory for regression_transform_planar.1']
    #allocation6 [shape = 's32[2]{0}', space=sflag, size = 0x8, scoped, tag = 'scoped memory for regression_transform_planar.1']
    #allocation7 [shape = 'u8[65536]{0}', space=vmem, size = 0x10000, scoped, tag = 'input window, operand 2']
    #allocation8 [shape = 's32[2]{0}', space=sflag, size = 0x8, scoped, tag = 'scoped memory for regression_transform_planar.1']
    #allocation9 [shape = 'u8[163840]{0}', space=vmem, size = 0x28000, scoped, tag = 'input window, operand 3']
    #allocation10 [shape = 'u8[65536]{0}', space=vmem, size = 0x10000, scoped, tag = 'output window, operand 0']
    #allocation11 [shape = 'u8[163840]{0}', space=vmem, size = 0x28000, scoped, tag = 'output window, operand 1']
    #allocation12 [shape = 's32[2]{0}', space=sflag, size = 0x8, scoped, tag = 'scoped memory for regression_transform_planar.1']
    %19 = vsyncpa [#allocation5], 0
    %s20 = scalar_lea.sflag [#allocation5], 1
    %21 = vsyncpa %s20, 0
    %22 = vsyncpa [#allocation8], 0
    %s23 = scalar_lea.sflag [#allocation8], 1
    %24 = vsyncpa %s23, 0
    %25 = vsyncpa [#allocation6], 0
    %s26 = scalar_lea.sflag [#allocation6], 1
    %27 = vsyncpa %s26, 0
    %28 = vsyncpa [#allocation12], 0
    %s29 = scalar_lea.sflag [#allocation12], 1
    %30 = vsyncpa %s29, 0
    loop: start=0, step=1, limit=4
    $region2: #{regression_transform_planar.1} parent=1 // loop_pre_header
      _
    $region3: #{regression_transform_planar.1} parent=1 // loop_header
      %s32 = sphi 0, %s36
      %p33 = scmp.ge.s32.totalorder %s32, 4
      %s39 = sphi 0, %s51
      %s40 = sphi 0, %s47
      %s41 = sphi 0, %s39
      %s42 = sphi 0, %s40
      %s43 = sphi 0, %s41
      %s44 = sphi 0, %s42
      %s56 = sphi 0, %s58
      %s59 = sphi 0, %s56
      %s60 = sphi 0, %s59
      %s76 = sphi 0, %s60
      %s84 = sphi 0, %s86
      %s87 = sphi 0, %s84
      %s88 = sphi 0, %s87
      %s104 = sphi 0, %s88
      %s112 = sphi 0, %s114
      %s115 = sphi 0, %s112
      %s116 = sphi 0, %s115
      %s132 = sphi 0, %s116
      %s140 = sphi 0, %s142
      %s143 = sphi 0, %s140
      %s144 = sphi 0, %s143
      %s160 = sphi 0, %s144
      %s168 = sphi 0, %s170
      %s171 = sphi 0, %s168
      %s172 = sphi 0, %s171
      %s188 = sphi 0, %s172
    $region4: #{regression_transform_planar.1} parent=1 // loop_header_branch
      %35 = sbr.rel (%p33) target = $region8
    $region5: #{regression_transform_planar.1} parent=1 // loop_body
      %s37 = ssub.s32 %s32, 1
      %s38 = ssub.s32 %s32, 2
      %s45 = sadd.s32 1, %s40
      %p46 = scmp.ge.s32.totalorder %s45, 1
      %s47 = scalar_select %p46, 0, %s45
      %s48 = sadd.s32 1, %s39
      %s49 = scalar_select %p46, %s48, %s39
      %p50 = scmp.ge.s32.totalorder %s49, 2
      %s51 = scalar_select %p50, 0, %s49
      %s52 = ssub.s32 %s39, %s51
      %s53 = ssub.s32 %s40, %s47
      %s54 = sor.u32 %s52, %s53
      %p55 = scmp.eq.s32.totalorder %s54, 0
      %s57 = sadd.s32 %s56, 1
      %s58 = scalar_select %p55, %s56, %s57
      %p61 = pneg %p55
      %p62 = scmp.eq.s32.totalorder %s32, 1
      %p63 = por %p61, %p62
      %p64 = scmp.ne.s32.totalorder %s56, %s59
      %p65 = scmp.eq.s32.totalorder %s32, 0
      %p66 = por %p64, %p65
      %p67 = scmp.ne.s32.totalorder %s56, %s59
      %p68 = scmp.eq.s32.totalorder %s37, 1
      %p69 = por %p67, %p68
      %p70 = scmp.ne.s32.totalorder %s59, %s60
      %p71 = scmp.eq.s32.totalorder %s37, 0
      %p72 = por %p70, %p71
      %p73 = scmp.ne.s32.totalorder %s59, %s60
      %p74 = scmp.eq.s32.totalorder %s38, 1
      %p75 = por %p73, %p74
      %p77 = scmp.ne.s32.totalorder %s60, %s76
      %p78 = scmp.eq.s32.totalorder %s38, 0
      %p79 = por %p77, %p78
      %s80 = ssub.s32 %s39, %s51
      %s81 = ssub.s32 %s40, %s47
      %s82 = sor.u32 %s80, %s81
      %p83 = scmp.eq.s32.totalorder %s82, 0
      %s85 = sadd.s32 %s84, 1
      %s86 = scalar_select %p83, %s84, %s85
      %p89 = pneg %p83
      %p90 = scmp.eq.s32.totalorder %s32, 1
      %p91 = por %p89, %p90
      %p92 = scmp.ne.s32.totalorder %s84, %s87
      %p93 = scmp.eq.s32.totalorder %s32, 0
      %p94 = por %p92, %p93
      %p95 = scmp.ne.s32.totalorder %s84, %s87
      %p96 = scmp.eq.s32.totalorder %s37, 1
      %p97 = por %p95, %p96
      %p98 = scmp.ne.s32.totalorder %s87, %s88
      %p99 = scmp.eq.s32.totalorder %s37, 0
      %p100 = por %p98, %p99
      %p101 = scmp.ne.s32.totalorder %s87, %s88
      %p102 = scmp.eq.s32.totalorder %s38, 1
      %p103 = por %p101, %p102
      %p105 = scmp.ne.s32.totalorder %s88, %s104
      %p106 = scmp.eq.s32.totalorder %s38, 0
      %p107 = por %p105, %p106
      %s108 = ssub.s32 %s39, %s51
      %s109 = ssub.s32 %s40, %s47
      %s110 = sor.u32 %s108, %s109
      %p111 = scmp.eq.s32.totalorder %s110, 0
      %s113 = sadd.s32 %s112, 1
      %s114 = scalar_select %p111, %s112, %s113
      %p117 = pneg %p111
      %p118 = scmp.eq.s32.totalorder %s32, 1
      %p119 = por %p117, %p118
      %p120 = scmp.ne.s32.totalorder %s112, %s115
      %p121 = scmp.eq.s32.totalorder %s32, 0
      %p122 = por %p120, %p121
      %p123 = scmp.ne.s32.totalorder %s112, %s115
      %p124 = scmp.eq.s32.totalorder %s37, 1
      %p125 = por %p123, %p124
      %p126 = scmp.ne.s32.totalorder %s115, %s116
      %p127 = scmp.eq.s32.totalorder %s37, 0
      %p128 = por %p126, %p127
      %p129 = scmp.ne.s32.totalorder %s115, %s116
      %p130 = scmp.eq.s32.totalorder %s38, 1
      %p131 = por %p129, %p130
      %p133 = scmp.ne.s32.totalorder %s116, %s132
      %p134 = scmp.eq.s32.totalorder %s38, 0
      %p135 = por %p133, %p134
      %s136 = ssub.s32 %s39, %s51
      %s137 = ssub.s32 %s40, %s47
      %s138 = sor.u32 %s136, %s137
      %p139 = scmp.eq.s32.totalorder %s138, 0
      %s141 = sadd.s32 %s140, 1
      %s142 = scalar_select %p139, %s140, %s141
      %p145 = pneg %p139
      %p146 = scmp.eq.s32.totalorder %s32, 1
      %p147 = por %p145, %p146
      %p148 = scmp.ne.s32.totalorder %s140, %s143
      %p149 = scmp.eq.s32.totalorder %s32, 0
      %p150 = por %p148, %p149
      %p151 = scmp.ne.s32.totalorder %s140, %s143
      %p152 = scmp.eq.s32.totalorder %s37, 1
      %p153 = por %p151, %p152
      %p154 = scmp.ne.s32.totalorder %s143, %s144
      %p155 = scmp.eq.s32.totalorder %s37, 0
      %p156 = por %p154, %p155
      %p157 = scmp.ne.s32.totalorder %s143, %s144
      %p158 = scmp.eq.s32.totalorder %s38, 1
      %p159 = por %p157, %p158
      %p161 = scmp.ne.s32.totalorder %s144, %s160
      %p162 = scmp.eq.s32.totalorder %s38, 0
      %p163 = por %p161, %p162
      %s164 = ssub.s32 %s39, %s51
      %s165 = ssub.s32 %s40, %s47
      %s166 = sor.u32 %s164, %s165
      %p167 = scmp.eq.s32.totalorder %s166, 0
      %s169 = sadd.s32 %s168, 1
      %s170 = scalar_select %p167, %s168, %s169
      %p173 = pneg %p167
      %p174 = scmp.eq.s32.totalorder %s32, 1
      %p175 = por %p173, %p174
      %p176 = scmp.ne.s32.totalorder %s168, %s171
      %p177 = scmp.eq.s32.totalorder %s32, 0
      %p178 = por %p176, %p177
      %p179 = scmp.ne.s32.totalorder %s168, %s171
      %p180 = scmp.eq.s32.totalorder %s37, 1
      %p181 = por %p179, %p180
      %p182 = scmp.ne.s32.totalorder %s171, %s172
      %p183 = scmp.eq.s32.totalorder %s37, 0
      %p184 = por %p182, %p183
      %p185 = scmp.ne.s32.totalorder %s171, %s172
      %p186 = scmp.eq.s32.totalorder %s38, 1
      %p187 = por %p185, %p186
      %p189 = scmp.ne.s32.totalorder %s172, %s188
      %p190 = scmp.eq.s32.totalorder %s38, 0
      %p191 = por %p189, %p190
      %p192 = scmp.le.s32.totalorder 1, %s32
      %p193 = scmp.lt.s32.totalorder %s32, 3
      %p194 = pnand %p192, %p193
      %p195 = pneg %p194
      // Predicated region
      $region9: #{regression_transform_planar.1} parent=5 // pred_check
        _
      $region10: #{regression_transform_planar.1} parent=5 // pred_check_branch
        %197 = sbr.rel (%p194) target = $region12
      $region11: #{regression_transform_planar.1} parent=5 // pred_region
        %s198 = ssub.s32 %s32, 1
      $region12: #{regression_transform_planar.1} parent=5 // pred_fallthru
        _
      %p199 = scmp.lt.s32.totalorder %s32, 2
      // Predicated region
      $region13: #{regression_transform_planar.1} parent=5 // pred_check
        %p200 = pneg %p199
      $region14: #{regression_transform_planar.1} parent=5 // pred_check_branch
        %202 = sbr.rel (%p200) target = $region16
      $region15: #{regression_transform_planar.1} parent=5 // pred_region
        // Predicated region
        $region17: #{regression_transform_planar.1} parent=15 // pred_check
          %p203 = pneg %p66
        $region18: #{regression_transform_planar.1} parent=15 // pred_check_branch
          %205 = sbr.rel (%p203) target = $region20
        $region19: #{regression_transform_planar.1} parent=15 // pred_region
          %s206 = sand.u32 %s56, 1
          %s207 = scalar_lea.sflag [#allocation5], %s206
          %s208 = sand.u32 %s56, 1
          %s209 = smul.addr %s208, 64
          %s210 = scalar_lea.vmem [#allocation4], %s209
          %s211 = smul.u32 2, %s40
          %213 = vsyncadd %s207, 0
          %s214 = smul.addr %s39, 8
          %s215 = sadd.s32 %s211, %s214
          %s216 = smul.addr %s215, 8
          %s217 = scalar_lea.hbm %s1, %s216
          %s218 = sshll.u32 %s217, 4
          %s219 = int_to_ptr.hbm [resolvable:$true] %s218
          %s220 = sshll.u32 %s210, 4
          %s221 = int_to_ptr.vmem [resolvable:$true] %s220
          %226 = dma.hbm_to_vmem [thread:$0]  %s219, 1024, %s221, %s207, 128, 128, 8
        $region20: #{regression_transform_planar.1} parent=15 // pred_fallthru
          _
        // Predicated region
        $region21: #{regression_transform_planar.1} parent=15 // pred_check
          %p227 = pneg %p94
        $region22: #{regression_transform_planar.1} parent=15 // pred_check_branch
          %229 = sbr.rel (%p227) target = $region24
        $region23: #{regression_transform_planar.1} parent=15 // pred_region
          %s230 = sand.u32 %s32, 1
          %s231 = scalar_lea.sflag [#allocation8], %s230
          %s232 = sand.u32 %s84, 1
          %s233 = smul.addr %s232, 64
          %s234 = scalar_lea.vmem [#allocation7], %s233
          %s235 = smul.u32 2, %s40
          %237 = vsyncadd %s231, 0
          %s238 = smul.addr %s39, 8
          %s239 = sadd.s32 %s235, %s238
          %s240 = smul.addr %s239, 8
          %s241 = scalar_lea.hbm %s2, %s240
          %s242 = sshll.u32 %s241, 4
          %s243 = int_to_ptr.hbm [resolvable:$true] %s242
          %s244 = sshll.u32 %s234, 4
          %s245 = int_to_ptr.vmem [resolvable:$true] %s244
          %250 = dma.hbm_to_vmem [thread:$0]  %s243, 1024, %s245, %s231, 128, 128, 8
        $region24: #{regression_transform_planar.1} parent=15 // pred_fallthru
          _
        // Predicated region
        $region25: #{regression_transform_planar.1} parent=15 // pred_check
          %p251 = pneg %p122
        $region26: #{regression_transform_planar.1} parent=15 // pred_check_branch
          %253 = sbr.rel (%p251) target = $region28
        $region27: #{regression_transform_planar.1} parent=15 // pred_region
          %s254 = sand.u32 %s32, 1
          %s255 = scalar_lea.sflag [#allocation8], %s254
          %s256 = sand.u32 %s112, 1
          %s257 = smul.addr %s256, 160
          %s258 = scalar_lea.vmem [#allocation9], %s257
          %s259 = smul.u32 2, %s40
          %261 = vsyncadd %s255, 0
          %s262 = smul.addr %s39, 20
          %s263 = sadd.s32 %s259, %s262
          %s264 = smul.addr %s263, 8
          %s265 = scalar_lea.hbm %s3, %s264
          %s266 = sshll.u32 %s265, 4
          %s267 = int_to_ptr.hbm [resolvable:$true] %s266
          %s268 = sshll.u32 %s258, 4
          %s269 = int_to_ptr.vmem [resolvable:$true] %s268
          %274 = dma.hbm_to_vmem [thread:$0]  %s267, 2560, %s269, %s255, 128, 128, 8
        $region28: #{regression_transform_planar.1} parent=15 // pred_fallthru
          _
      $region16: #{regression_transform_planar.1} parent=5 // pred_fallthru
        _
      %p275 = scmp.le.s32.totalorder 1, %s32
      %p276 = scmp.lt.s32.totalorder %s32, 3
      %p277 = pnand %p275, %p276
      %p278 = pneg %p277
      // Predicated region
      $region29: #{regression_transform_planar.1} parent=5 // pred_check
        _
      $region30: #{regression_transform_planar.1} parent=5 // pred_check_branch
        %280 = sbr.rel (%p277) target = $region32
      $region31: #{regression_transform_planar.1} parent=5 // pred_region
        %s281 = ssub.s32 %s32, 1
        %s282 = sand.u32 %s59, 1
        %s283 = scalar_lea.sflag [#allocation5], %s282
        %s284 = sand.u32 %s59, 1
        %s285 = smul.addr %s284, 64
        %s286 = scalar_lea.vmem [#allocation4], %s285
        // Predicated region
        $region33: #{regression_transform_planar.1} parent=31 // pred_check
          %p287 = pneg %p72
        $region34: #{regression_transform_planar.1} parent=31 // pred_check_branch
          %289 = sbr.rel (%p287) target = $region36
        $region35: #{regression_transform_planar.1} parent=31 // pred_region
          %291 = dma.done %s283, 1024
        $region36: #{regression_transform_planar.1} parent=31 // pred_fallthru
          _
        %s292 = sand.u32 %s37, 1
        %s293 = scalar_lea.sflag [#allocation8], %s292
        %s294 = sand.u32 %s87, 1
        %s295 = smul.addr %s294, 64
        %s296 = scalar_lea.vmem [#allocation7], %s295
        // Predicated region
        $region37: #{regression_transform_planar.1} parent=31 // pred_check
          %p297 = pneg %p100
        $region38: #{regression_transform_planar.1} parent=31 // pred_check_branch
          %299 = sbr.rel (%p297) target = $region40
        $region39: #{regression_transform_planar.1} parent=31 // pred_region
          %301 = dma.done %s293, 1024
        $region40: #{regression_transform_planar.1} parent=31 // pred_fallthru
          _
        %s302 = sand.u32 %s37, 1
        %s303 = scalar_lea.sflag [#allocation8], %s302
        %s304 = sand.u32 %s115, 1
        %s305 = smul.addr %s304, 160
        %s306 = scalar_lea.vmem [#allocation9], %s305
        // Predicated region
        $region41: #{regression_transform_planar.1} parent=31 // pred_check
          %p307 = pneg %p128
        $region42: #{regression_transform_planar.1} parent=31 // pred_check_branch
          %309 = sbr.rel (%p307) target = $region44
        $region43: #{regression_transform_planar.1} parent=31 // pred_region
          %311 = dma.done %s303, 2560
        $region44: #{regression_transform_planar.1} parent=31 // pred_fallthru
          _
        %s312 = sand.u32 %s59, 1
        %s313 = scalar_lea.sflag [#allocation5], %s312
        %s314 = sand.u32 %s59, 1
        %s315 = smul.addr %s314, 64
        %s316 = scalar_lea.vmem [#allocation4], %s315
        %p317 = pneg %p72
        %p318 = pneg %p69
        %s319 = sand.u32 %s37, 1
        %s320 = scalar_lea.sflag [#allocation8], %s319
        %s321 = sand.u32 %s87, 1
        %s322 = smul.addr %s321, 64
        %s323 = scalar_lea.vmem [#allocation7], %s322
        %p324 = pneg %p100
        %p325 = pneg %p97
        %s326 = sand.u32 %s37, 1
        %s327 = scalar_lea.sflag [#allocation8], %s326
        %s328 = sand.u32 %s115, 1
        %s329 = smul.addr %s328, 160
        %s330 = scalar_lea.vmem [#allocation9], %s329
        %p331 = pneg %p128
        %p332 = pneg %p125
        %p333 = pneg %p156
        %p334 = pneg %p153
        %s335 = sand.u32 %s143, 1
        %s336 = scalar_lea.sflag [#allocation6], %s335
        %s337 = sand.u32 %s143, 1
        %s338 = smul.addr %s337, 64
        %s339 = scalar_lea.vmem [#allocation10], %s338
        %p340 = pneg %p184
        %p341 = pneg %p181
        %s342 = sand.u32 %s171, 1
        %s343 = scalar_lea.sflag [#allocation12], %s342
        %s344 = sand.u32 %s171, 1
        %s345 = smul.addr %s344, 160
        %s346 = scalar_lea.vmem [#allocation11], %s345
        %s347 = smul.u32 2, %s42
        %s348 = smul.u32 2, %s42
        %s349 = smul.u32 2, %s42
        %s350 = smul.u32 2, %s42
        %s351 = smul.u32 2, %s42
        %s352 = sld [smem:[#allocation3]]
        %s353 = scvt.s32.f32 %s352
        %s354 = sld [smem:[#allocation3 + $0x1]]
        %s355 = scvt.s32.f32 %s354
        %v356 = vld [vmem:[%s286] sm:$0xff]
        %v357 = vld [vmem:[%s286 + $0x8] sm:$0xff]
        %s358 = scalar_lea.vmem %s286, 16 [#allocation4]
        %v359 = vld [vmem:[%s358] sm:$0xff]
        %v360 = vld [vmem:[%s358 + $0x8] sm:$0xff]
        %s361 = scalar_lea.vmem %s286, 32 [#allocation4]
        %v362 = vld [vmem:[%s361] sm:$0xff]
        %v363 = vld [vmem:[%s361 + $0x8] sm:$0xff]
        %s364 = scalar_lea.vmem %s286, 48 [#allocation4]
        %v365 = vld [vmem:[%s364] sm:$0xff]
        %v366 = vld [vmem:[%s364 + $0x8] sm:$0xff]
        %v367 = vsub.f32 %v362, %v356
        %v368 = vsub.f32 %v363, %v357
        %v369 = vsub.f32 %v365, %v359
        %v370 = vsub.f32 %v366, %v360
        %v371 = vmul.f32 %v367, 0.5
        %v372 = vmul.f32 %v368, 0.5
        %v373 = vadd.f32 %v356, %v371
        %v374 = vadd.f32 %v357, %v372
        %v375 = vmul.f32 %v369, 0.5
        %v376 = vmul.f32 %v370, 0.5
        %v377 = vadd.f32 %v359, %v375
        %v378 = vadd.f32 %v360, %v376
        %v379 = vmul.f32 %v367, 0.1
        %v380 = vmul.f32 %v368, 0.1
        %v381 = vmul.f32 %v369, 0.1
        %v382 = vmul.f32 %v370, 0.1
        %v383 = vld [vmem:[%s296] sm:$0xff]
        %v384 = vld [vmem:[%s296 + $0x8] sm:$0xff]
        %s385 = scalar_lea.vmem %s296, 16 [#allocation7]
        %v386 = vld [vmem:[%s385] sm:$0xff]
        %v387 = vld [vmem:[%s385 + $0x8] sm:$0xff]
        %s388 = scalar_lea.vmem %s296, 32 [#allocation7]
        %v389 = vld [vmem:[%s388] sm:$0xff]
        %v390 = vld [vmem:[%s388 + $0x8] sm:$0xff]
        %v391 = vmul.f32 %v389, 0.2
        %v392 = vmul.f32 %v390, 0.2
        %s393 = scalar_lea.vmem %s296, 48 [#allocation7]
        %v394 = vld [vmem:[%s393] sm:$0xff]
        %v395 = vld [vmem:[%s393 + $0x8] sm:$0xff]
        %v396 = vmul.f32 %v394, 0.2
        %v397 = vmul.f32 %v395, 0.2
        %v398 = vmul.f32 %v383, %v379
        %v399 = vmul.f32 %v384, %v380
        %v400 = vadd.f32 %v373, %v398
        %v401 = vadd.f32 %v374, %v399
        %v402 = vmul.f32 %v386, %v381
        %v403 = vmul.f32 %v387, %v382
        %v404 = vadd.f32 %v377, %v402
        %v405 = vadd.f32 %v378, %v403
        %v406 = vmul.f32 %v391, 1.442695
        %v407 = vpow.pop %v406
        %v408 = vmul.f32 %v392, 1.442695
        %v409 = vpow.pop %v408
        %v410 = vmul.f32 %v407, %v367
        %v411 = vmul.f32 %v409, %v368
        %v412 = vmul.f32 %v410, 0.5
        %v413 = vmul.f32 %v411, 0.5
        %v414 = vmul.f32 %v396, 1.442695
        %v415 = vpow.pop %v414
        %v416 = vmul.f32 %v397, 1.442695
        %v417 = vpow.pop %v416
        %v418 = vmul.f32 %v415, %v369
        %v419 = vmul.f32 %v417, %v370
        %v420 = vmul.f32 %v418, 0.5
        %v421 = vmul.f32 %v419, 0.5
        %v422 = vsub.f32 %v400, %v412
        %v423 = vsub.f32 %v401, %v413
        %v424 = vmax.f32 %v422, 0.0
        %v425 = vmax.f32 %v423, 0.0
        %v426 = vstv %s355
        %v427 = vmin.f32 %v426, %v424
        %v428 = vmin.f32 %v426, %v425
        %429 = vst [vmem:[%s339] sm:$0xff] %v427
        %430 = vst [vmem:[%s339 + $0x8] sm:$0xff] %v428
        %v431 = vsub.f32 %v404, %v420
        %v432 = vsub.f32 %v405, %v421
        %v433 = vmax.f32 %v431, 0.0
        %v434 = vmax.f32 %v432, 0.0
        %v435 = vstv %s353
        %v436 = vmin.f32 %v435, %v433
        %v437 = vmin.f32 %v435, %v434
        %s438 = scalar_lea.vmem %s339, 16 [#allocation10]
        %439 = vst [vmem:[%s438] sm:$0xff] %v436
        %440 = vst [vmem:[%s438 + $0x8] sm:$0xff] %v437
        %v441 = vadd.f32 %v400, %v412
        %v442 = vadd.f32 %v401, %v413
        %v443 = vmax.f32 %v441, 0.0
        %v444 = vmax.f32 %v442, 0.0
        %v445 = vmin.f32 %v426, %v443
        %v446 = vmin.f32 %v426, %v444
        %s447 = scalar_lea.vmem %s339, 32 [#allocation10]
        %448 = vst [vmem:[%s447] sm:$0xff] %v445
        %449 = vst [vmem:[%s447 + $0x8] sm:$0xff] %v446
        %v450 = vadd.f32 %v404, %v420
        %v451 = vadd.f32 %v405, %v421
        %v452 = vmax.f32 %v450, 0.0
        %v453 = vmax.f32 %v451, 0.0
        %v454 = vmin.f32 %v435, %v452
        %v455 = vmin.f32 %v435, %v453
        %s456 = scalar_lea.vmem %s339, 48 [#allocation10]
        %457 = vst [vmem:[%s456] sm:$0xff] %v454
        %458 = vst [vmem:[%s456 + $0x8] sm:$0xff] %v455
        %v459 = vld [vmem:[%s306] sm:$0xff]
        %v460 = vld [vmem:[%s306 + $0x8] sm:$0xff]
        %v461 = vmul.f32 %v459, %v379
        %v462 = vmul.f32 %v460, %v380
        %v463 = vadd.f32 %v373, %v461
        %v464 = vadd.f32 %v374, %v462
        %s465 = scalar_lea.vmem %s306, 16 [#allocation9]
        %v466 = vld [vmem:[%s465] sm:$0xff]
        %v467 = vld [vmem:[%s465 + $0x8] sm:$0xff]
        %v468 = vmul.f32 %v466, %v381
        %v469 = vmul.f32 %v467, %v382
        %v470 = vadd.f32 %v377, %v468
        %v471 = vadd.f32 %v378, %v469
        %v472 = vmax.f32 %v463, 0.0
        %v473 = vmax.f32 %v464, 0.0
        %v474 = vmin.f32 %v426, %v472
        %v475 = vmin.f32 %v426, %v473
        %476 = vst [vmem:[%s346] sm:$0xff] %v474
        %477 = vst [vmem:[%s346 + $0x8] sm:$0xff] %v475
        %v478 = vmax.f32 %v470, 0.0
        %v479 = vmax.f32 %v471, 0.0
        %v480 = vmin.f32 %v435, %v478
        %v481 = vmin.f32 %v435, %v479
        %s482 = scalar_lea.vmem %s346, 16 [#allocation11]
        %483 = vst [vmem:[%s482] sm:$0xff] %v480
        %484 = vst [vmem:[%s482 + $0x8] sm:$0xff] %v481
        %s485 = scalar_lea.vmem %s306, 32 [#allocation9]
        %v486 = vld [vmem:[%s485] sm:$0xff]
        %v487 = vld [vmem:[%s485 + $0x8] sm:$0xff]
        %v488 = vmul.f32 %v486, %v379
        %v489 = vmul.f32 %v487, %v380
        %v490 = vadd.f32 %v373, %v488
        %v491 = vadd.f32 %v374, %v489
        %s492 = scalar_lea.vmem %s306, 48 [#allocation9]
        %v493 = vld [vmem:[%s492] sm:$0xff]
        %v494 = vld [vmem:[%s492 + $0x8] sm:$0xff]
        %v495 = vmul.f32 %v493, %v381
        %v496 = vmul.f32 %v494, %v382
        %v497 = vadd.f32 %v377, %v495
        %v498 = vadd.f32 %v378, %v496
        %v499 = vmax.f32 %v490, 0.0
        %v500 = vmax.f32 %v491, 0.0
        %v501 = vmin.f32 %v426, %v499
        %v502 = vmin.f32 %v426, %v500
        %s503 = scalar_lea.vmem %s346, 32 [#allocation11]
        %504 = vst [vmem:[%s503] sm:$0xff] %v501
        %505 = vst [vmem:[%s503 + $0x8] sm:$0xff] %v502
        %v506 = vmax.f32 %v497, 0.0
        %v507 = vmax.f32 %v498, 0.0
        %v508 = vmin.f32 %v435, %v506
        %v509 = vmin.f32 %v435, %v507
        %s510 = scalar_lea.vmem %s346, 48 [#allocation11]
        %511 = vst [vmem:[%s510] sm:$0xff] %v508
        %512 = vst [vmem:[%s510 + $0x8] sm:$0xff] %v509
        %s513 = scalar_lea.vmem %s306, 64 [#allocation9]
        %v514 = vld [vmem:[%s513] sm:$0xff]
        %v515 = vld [vmem:[%s513 + $0x8] sm:$0xff]
        %v516 = vmul.f32 %v514, %v379
        %v517 = vmul.f32 %v515, %v380
        %v518 = vadd.f32 %v373, %v516
        %v519 = vadd.f32 %v374, %v517
        %s520 = scalar_lea.vmem %s306, 80 [#allocation9]
        %v521 = vld [vmem:[%s520] sm:$0xff]
        %v522 = vld [vmem:[%s520 + $0x8] sm:$0xff]
        %v523 = vmul.f32 %v521, %v381
        %v524 = vmul.f32 %v522, %v382
        %v525 = vadd.f32 %v377, %v523
        %v526 = vadd.f32 %v378, %v524
        %v527 = vmax.f32 %v518, 0.0
        %v528 = vmax.f32 %v519, 0.0
        %v529 = vmin.f32 %v426, %v527
        %v530 = vmin.f32 %v426, %v528
        %s531 = scalar_lea.vmem %s346, 64 [#allocation11]
        %532 = vst [vmem:[%s531] sm:$0xff] %v529
        %533 = vst [vmem:[%s531 + $0x8] sm:$0xff] %v530
        %v534 = vmax.f32 %v525, 0.0
        %v535 = vmax.f32 %v526, 0.0
        %v536 = vmin.f32 %v435, %v534
        %v537 = vmin.f32 %v435, %v535
        %s538 = scalar_lea.vmem %s346, 80 [#allocation11]
        %539 = vst [vmem:[%s538] sm:$0xff] %v536
        %540 = vst [vmem:[%s538 + $0x8] sm:$0xff] %v537
        %s541 = scalar_lea.vmem %s306, 96 [#allocation9]
        %v542 = vld [vmem:[%s541] sm:$0xff]
        %v543 = vld [vmem:[%s541 + $0x8] sm:$0xff]
        %v544 = vmul.f32 %v542, %v379
        %v545 = vmul.f32 %v543, %v380
        %v546 = vadd.f32 %v373, %v544
        %v547 = vadd.f32 %v374, %v545
        %s548 = scalar_lea.vmem %s306, 112 [#allocation9]
        %v549 = vld [vmem:[%s548] sm:$0xff]
        %v550 = vld [vmem:[%s548 + $0x8] sm:$0xff]
        %v551 = vmul.f32 %v549, %v381
        %v552 = vmul.f32 %v550, %v382
        %v553 = vadd.f32 %v377, %v551
        %v554 = vadd.f32 %v378, %v552
        %v555 = vmax.f32 %v546, 0.0
        %v556 = vmax.f32 %v547, 0.0
        %v557 = vmin.f32 %v426, %v555
        %v558 = vmin.f32 %v426, %v556
        %s559 = scalar_lea.vmem %s346, 96 [#allocation11]
        %560 = vst [vmem:[%s559] sm:$0xff] %v557
        %561 = vst [vmem:[%s559 + $0x8] sm:$0xff] %v558
        %v562 = vmax.f32 %v553, 0.0
        %v563 = vmax.f32 %v554, 0.0
        %v564 = vmin.f32 %v435, %v562
        %v565 = vmin.f32 %v435, %v563
        %s566 = scalar_lea.vmem %s346, 112 [#allocation11]
        %567 = vst [vmem:[%s566] sm:$0xff] %v564
        %568 = vst [vmem:[%s566 + $0x8] sm:$0xff] %v565
        %s569 = scalar_lea.vmem %s306, 128 [#allocation9]
        %v570 = vld [vmem:[%s569] sm:$0xff]
        %v571 = vld [vmem:[%s569 + $0x8] sm:$0xff]
        %v572 = vmul.f32 %v570, %v379
        %v573 = vmul.f32 %v571, %v380
        %v574 = vadd.f32 %v373, %v572
        %v575 = vadd.f32 %v374, %v573
        %s576 = scalar_lea.vmem %s306, 144 [#allocation9]
        %v577 = vld [vmem:[%s576] sm:$0xff]
        %v578 = vld [vmem:[%s576 + $0x8] sm:$0xff]
        %v579 = vmul.f32 %v577, %v381
        %v580 = vmul.f32 %v578, %v382
        %v581 = vadd.f32 %v377, %v579
        %v582 = vadd.f32 %v378, %v580
        %v583 = vmax.f32 %v574, 0.0
        %v584 = vmax.f32 %v575, 0.0
        %v585 = vmin.f32 %v426, %v583
        %v586 = vmin.f32 %v426, %v584
        %s587 = scalar_lea.vmem %s346, 128 [#allocation11]
        %588 = vst [vmem:[%s587] sm:$0xff] %v585
        %589 = vst [vmem:[%s587 + $0x8] sm:$0xff] %v586
        %v590 = vmax.f32 %v581, 0.0
        %v591 = vmax.f32 %v582, 0.0
        %v592 = vmin.f32 %v435, %v590
        %v593 = vmin.f32 %v435, %v591
        %s594 = scalar_lea.vmem %s346, 144 [#allocation11]
        %595 = vst [vmem:[%s594] sm:$0xff] %v592
        %596 = vst [vmem:[%s594 + $0x8] sm:$0xff] %v593
        %s597 = sand.u32 %s143, 1
        %s598 = scalar_lea.sflag [#allocation6], %s597
        %s599 = sand.u32 %s143, 1
        %s600 = smul.addr %s599, 64
        %s601 = scalar_lea.vmem [#allocation10], %s600
        %s602 = sand.u32 %s171, 1
        %s603 = scalar_lea.sflag [#allocation12], %s602
        %s604 = sand.u32 %s171, 1
        %s605 = smul.addr %s604, 160
        %s606 = scalar_lea.vmem [#allocation11], %s605
        // Predicated region
        $region45: #{regression_transform_planar.1} parent=31 // pred_check
          %p607 = pneg %p153
        $region46: #{regression_transform_planar.1} parent=31 // pred_check_branch
          %609 = sbr.rel (%p607) target = $region48
        $region47: #{regression_transform_planar.1} parent=31 // pred_region
          %s610 = smul.u32 2, %s42
          %612 = vsyncadd %s598, 0
          %s613 = smul.addr %s41, 8
          %s614 = sadd.s32 %s610, %s613
          %s615 = smul.addr %s614, 8
          %s616 = scalar_lea.hbm %s4, %s615
          %s617 = sshll.u32 %s601, 4
          %s618 = int_to_ptr.vmem [resolvable:$true] %s617
          %s619 = sshll.u32 %s616, 4
          %s620 = int_to_ptr.hbm [resolvable:$true] %s619
          %625 = dma.vmem_to_hbm [thread:$0]  %s618, 1024, %s620, %s598, 128, 128, 8
        $region48: #{regression_transform_planar.1} parent=31 // pred_fallthru
          _
        // Predicated region
        $region49: #{regression_transform_planar.1} parent=31 // pred_check
          %p626 = pneg %p181
        $region50: #{regression_transform_planar.1} parent=31 // pred_check_branch
          %628 = sbr.rel (%p626) target = $region52
        $region51: #{regression_transform_planar.1} parent=31 // pred_region
          %s629 = smul.u32 2, %s42
          %631 = vsyncadd %s603, 0
          %s632 = smul.addr %s41, 20
          %s633 = sadd.s32 %s629, %s632
          %s634 = smul.addr %s633, 8
          %s635 = scalar_lea.hbm %s5, %s634
          %s636 = sshll.u32 %s606, 4
          %s637 = int_to_ptr.vmem [resolvable:$true] %s636
          %s638 = sshll.u32 %s635, 4
          %s639 = int_to_ptr.hbm [resolvable:$true] %s638
          %644 = dma.vmem_to_hbm [thread:$0]  %s637, 2560, %s639, %s603, 128, 128, 8
        $region52: #{regression_transform_planar.1} parent=31 // pred_fallthru
          _
      $region32: #{regression_transform_planar.1} parent=5 // pred_fallthru
        _
      %p645 = scmp.le.s32.totalorder 2, %s32
      // Predicated region
      $region53: #{regression_transform_planar.1} parent=5 // pred_check
        %p646 = pneg %p645
      $region54: #{regression_transform_planar.1} parent=5 // pred_check_branch
        %648 = sbr.rel (%p646) target = $region56
      $region55: #{regression_transform_planar.1} parent=5 // pred_region
        %s649 = ssub.s32 %s32, 2
        // Predicated region
        $region57: #{regression_transform_planar.1} parent=55 // pred_check
          %p650 = pneg %p159
        $region58: #{regression_transform_planar.1} parent=55 // pred_check_branch
          %652 = sbr.rel (%p650) target = $region60
        $region59: #{regression_transform_planar.1} parent=55 // pred_region
          %s653 = sand.u32 %s144, 1
          %s654 = scalar_lea.sflag [#allocation6], %s653
          %s655 = sand.u32 %s144, 1
          %s656 = smul.addr %s655, 64
          %s657 = scalar_lea.vmem [#allocation10], %s656
          %659 = dma.done %s654, 1024
        $region60: #{regression_transform_planar.1} parent=55 // pred_fallthru
          _
        // Predicated region
        $region61: #{regression_transform_planar.1} parent=55 // pred_check
          %p660 = pneg %p187
        $region62: #{regression_transform_planar.1} parent=55 // pred_check_branch
          %662 = sbr.rel (%p660) target = $region64
        $region63: #{regression_transform_planar.1} parent=55 // pred_region
          %s663 = sand.u32 %s172, 1
          %s664 = scalar_lea.sflag [#allocation12], %s663
          %s665 = sand.u32 %s172, 1
          %s666 = smul.addr %s665, 160
          %s667 = scalar_lea.vmem [#allocation11], %s666
          %669 = dma.done %s664, 2560
        $region64: #{regression_transform_planar.1} parent=55 // pred_fallthru
          _
      $region56: #{regression_transform_planar.1} parent=5 // pred_fallthru
        _
    $region6: #{regression_transform_planar.1} parent=1 // loop_footer
      %s36 = sadd.s32 1, %s32
    $region7: #{regression_transform_planar.1} parent=1 // loop_footer_branch
      %31 = sbr.rel target = $region3
    $region8: #{regression_transform_planar.1} parent=1 // loop_exit
      _
    %670 = vsyncpa [#allocation5], 1
    %s671 = scalar_lea.sflag [#allocation5], 1
    %672 = vsyncpa %s671, 1
    %673 = vsyncpa [#allocation8], 1
    %s674 = scalar_lea.sflag [#allocation8], 1
    %675 = vsyncpa %s674, 1
    %676 = vsyncpa [#allocation6], 1
    %s677 = scalar_lea.sflag [#allocation6], 1
    %678 = vsyncpa %s677, 1
    %679 = vsyncpa [#allocation12], 1
    %s680 = scalar_lea.sflag [#allocation12], 1
    %681 = vsyncpa %s680, 1

</llo_original>
